<compile_context>
chip_gen: v6e
topology: v6e:2x2x1
jax: 0.10.0
libtpu: 0.0.40
codegen_flags: <defaults>
</compile_context>

<pallas_src>
import functools

import jax
import jax.numpy as jnp
from jax.experimental import pallas as pl
from jax.experimental.pallas import tpu as pltpu


def _downsample_kernel(x_ref, we_ref, wo_ref, bias_ref, o_ref, *, C, Wq, Mo):
    # x_ref   : (2, Mq, 2C) flat even/odd-row operands for this tile.
    #           Flat index m = p*Wq + q over (row-pair p in [0, tm], folded col
    #           q in [0, Wq)); row-pair tm is the halo, col Wq-1 is a dummy
    #           column; Mq >= Mo + Wq + 1 (zero-padded tail).
    # we_ref  : (2C, 4C) fused even-row weight:
    #           [:, 0:C ]  kh=0 (kw=0 on col 2q, kw=1 on col 2q+1) -> same position
    #           [:, C:2C]  kh=0, kw=2 on col 2q                    -> taken from m+1
    #           [:,2C:3C]  kh=2 (kw=0, kw=1)                       -> taken from m+Wq
    #           [:,3C:4C]  kh=2, kw=2 on col 2q                    -> taken from m+Wq+1
    # wo_ref  : (2C, 2C) fused odd-row (kh=1) weight: [same | kw=2 shift]
    # bias_ref: (1, C)
    # o_ref   : (Mo, C) with Mo = tm*Wq (dummy rows/column dropped by wrapper)
    ye = jnp.dot(x_ref[0], we_ref[...], preferred_element_type=jnp.float32)
    yo = jnp.dot(x_ref[1], wo_ref[...], preferred_element_type=jnp.float32)
    cross = ye[:, C:2 * C] + yo[:, C:2 * C]
    res = (ye[:Mo, 0:C] + yo[:Mo, 0:C]              # (kh=0/1, kw=0/1) same position
           + cross[1:Mo + 1, :]                     # (kh=0/1, kw=2)   one col right
           + ye[Wq:Mo + Wq, 2 * C:3 * C]            # (kh=2,   kw=0/1) one row down
           + ye[Wq + 1:Mo + Wq + 1, 3 * C:4 * C]    # (kh=2,   kw=2)   row + col
           + bias_ref[...].astype(jnp.float32))
    o_ref[...] = res.astype(o_ref.dtype)


def _pick_tiling(N, C, Ho, Wq, itemsize):
    """Largest rows-per-tile fitting the generation's VMEM; >= 2 balanced steps."""
    try:
        vmem_cap = int(pltpu.get_tpu_info().vmem_capacity_bytes)
    except Exception:  # interpret mode / older jax: assume the smallest (v7x) VMEM
        vmem_cap = 64 * 1024 * 1024
    # ~64 MiB scoped limit on v5e/v6e (128 MiB physical), ~45 MiB on v7x (64 MiB).
    vmem_limit = int(min(0.70 * vmem_cap, 64 * 1024 * 1024))
    budget = int(0.85 * vmem_limit)

    def vmem_need(tm):
        mq = (tm + 1) * Wq + 8                         # flat axis incl. alignment pad
        mo = tm * Wq
        b_in = 2 * (2 * mq * 2 * C * itemsize)         # double-buffered input tile
        b_out = 2 * (mo * C * itemsize)                # double-buffered output tile
        b_w = 2 * ((2 * C * 4 * C) + (2 * C * 2 * C) + 2 * C) * itemsize
        b_tmp = mq * 7 * C * 4                         # ye / yo / res f32 live values
        return b_in + b_out + b_w + b_tmp + (2 << 20)  # + compiler slack

    tm = 1
    for t in range(1, Ho + 1):
        if vmem_need(t) <= budget:
            tm = t
        else:
            break
    num_rt = pl.cdiv(Ho, tm)
    # v7x has 2 TensorCores: keep at least 2 (and, when cheap, an even number
    # of) balanced grid steps.
    if N * num_rt < 2 and Ho > 1:
        num_rt = 2
    if (N * num_rt) % 2 == 1 and N * num_rt < 8 and num_rt < Ho:
        num_rt += 1
    tm = pl.cdiv(Ho, num_rt)                           # rebalance (only shrinks)
    vmem_limit = int(min(max(vmem_limit, vmem_need(tm)), int(0.95 * vmem_cap)))
    return tm, num_rt, vmem_limit


def downsample_block(x_nchw, weight_oihw, bias):
    """F.pad(x, (0,1,0,1)) followed by Conv2d(C, C, kernel=3, stride=2, pad=0)."""
    N, C, H, W = x_nchw.shape
    Ho = (H - 2) // 2 + 1
    Wo = (W - 2) // 2 + 1
    Wq = Wo + 1                                  # + dummy column (kw=2 source / sink)
    isz = jnp.dtype(x_nchw.dtype).itemsize

    tm, num_rt, vmem_limit = _pick_tiling(N, C, Ho, Wq, isz)
    NT = N * num_rt
    Hq = num_rt * tm + 1                         # row-pairs materialized (incl. halo)
    Hp, Wp = 2 * Hq, 2 * Wq
    Mo = tm * Wq                                 # output positions per tile
    Mq_raw = (tm + 1) * Wq                       # incl. the halo row-pair
    Mq = ((Mq_raw + 1 + 7) // 8) * 8             # sublane-aligned, >= Mo + Wq + 1

    # ---- input fold (one fused wrapper pass): NCHW -> per-tile flat even/odd ----
    x_nhwc = jnp.transpose(x_nchw, (0, 2, 3, 1))
    x_pad = jnp.pad(x_nhwc, ((0, 0), (0, Hp - H), (0, Wp - W), (0, 0)))
    xr = x_pad.reshape(N, Hq, 2, Wq, 2 * C)      # (row-pair, parity, col-pair fold)
    # per-tile slabs, each with its own 1-row-pair halo (duplicated across tiles)
    slabs = jnp.stack(
        [xr[:, r * tm:r * tm + tm + 1] for r in range(num_rt)], axis=1)
    xt = jnp.transpose(slabs, (0, 1, 3, 2, 4, 5))        # (N, nr, 2, tm+1, Wq, 2C)
    xt = xt.reshape(NT, 2, Mq_raw, 2 * C)
    xt = jnp.pad(xt, ((0, 0), (0, 0), (0, Mq - Mq_raw), (0, 0)))

    # ---- fused weights -----------------------------------------------------------
    w_t = jnp.transpose(weight_oihw, (2, 3, 1, 0))       # (kh, kw, cin, cout)
    zero = jnp.zeros((C, C), w_t.dtype)
    w_even = jnp.concatenate(
        [jnp.concatenate([w_t[0, 0], w_t[0, 2], w_t[2, 0], w_t[2, 2]], axis=1),
         jnp.concatenate([w_t[0, 1], zero,      w_t[2, 1], zero],      axis=1)],
        axis=0)                                          # (2C, 4C)
    w_odd = jnp.concatenate(
        [jnp.concatenate([w_t[1, 0], w_t[1, 2]], axis=1),
         jnp.concatenate([w_t[1, 1], zero],      axis=1)],
        axis=0)                                          # (2C, 2C)
    bias2d = bias.reshape(1, C)

    kernel = functools.partial(_downsample_kernel, C=C, Wq=Wq, Mo=Mo)
    flops = 2 * NT * Mq * (2 * C) * (6 * C)
    bytes_accessed = int(
        (xt.size + w_even.size + w_odd.size + bias2d.size + NT * Mo * C) * isz)

    out = pl.pallas_call(
        kernel,
        out_shape=jax.ShapeDtypeStruct((NT, Mo, C), x_nchw.dtype),
        grid=(NT,),
        in_specs=[
            pl.BlockSpec((None, 2, Mq, 2 * C), lambda i: (i, 0, 0, 0)),
            pl.BlockSpec((2 * C, 4 * C), lambda i: (0, 0)),
            pl.BlockSpec((2 * C, 2 * C), lambda i: (0, 0)),
            pl.BlockSpec((1, C), lambda i: (0, 0)),
        ],
        out_specs=pl.BlockSpec((None, Mo, C), lambda i: (i, 0, 0)),
        compiler_params=pltpu.CompilerParams(
            dimension_semantics=("parallel",),
            vmem_limit_bytes=vmem_limit),
        cost_estimate=pl.CostEstimate(flops=flops, transcendentals=0,
                                      bytes_accessed=bytes_accessed),
    )(xt, w_even, w_odd, bias2d)

    # one fused slice+transpose back to NCHW (drops dummy rows / dummy column)
    out = out.reshape(N, num_rt * tm, Wq, C)[:, :Ho, :Wo, :]
    return jnp.transpose(out, (0, 3, 1, 2))


if __name__ == "__main__":
    key = jax.random.PRNGKey(0)
    k_x, k_w, k_b = jax.random.split(key, 3)

    # main smoke test (shapes consistent with the module)
    N, C, H, W = 2, 4, 16, 16
    x = jax.random.normal(k_x, (N, C, H, W), jnp.float32)
    weight = jax.random.normal(k_w, (C, C, 3, 3), jnp.float32) * (1.0 / 6.0)
    bias = jax.random.normal(k_b, (C,), jnp.float32) * 0.1

    out = jax.block_until_ready(jax.jit(downsample_block)(x, weight, bias))

    ref = jax.lax.conv_general_dilated(
        x, weight, window_strides=(2, 2), padding=((0, 1), (0, 1)),
        dimension_numbers=("NCHW", "OIHW", "NCHW"),
    ) + bias.reshape(1, C, 1, 1)

    assert out.shape == (N, C, H // 2, W // 2), out.shape
    assert jnp.allclose(out, ref, atol=1e-4, rtol=1e-4), float(
        jnp.max(jnp.abs(out - ref)))

    # odd spatial dims + batch 1 exercises the multi-row-tile (num_rt > 1) path
    N2, C2, H2, W2 = 1, 8, 10, 14
    x2 = jax.random.normal(k_x, (N2, C2, H2, W2), jnp.float32)
    w2 = jax.random.normal(k_w, (C2, C2, 3, 3), jnp.float32) * (1.0 / 6.0)
    b2 = jax.random.normal(k_b, (C2,), jnp.float32) * 0.1
    out2 = jax.block_until_ready(jax.jit(downsample_block)(x2, w2, b2))
    ref2 = jax.lax.conv_general_dilated(
        x2, w2, window_strides=(2, 2), padding=((0, 1), (0, 1)),
        dimension_numbers=("NCHW", "OIHW", "NCHW"),
    ) + b2.reshape(1, C2, 1, 1)
    assert out2.shape == ref2.shape, (out2.shape, ref2.shape)
    assert jnp.allclose(out2, ref2, atol=1e-4, rtol=1e-4), float(
        jnp.max(jnp.abs(out2 - ref2)))

    print("KERNEL_OK")
</pallas_src>

<mosaic_0001>
module attributes {stable_mosaic.version = 11 : i64} {
  func.func @_downsample_kernel(%arg0: i32, %arg1: memref<1x2x88x8xf32, #tpu.memory_space<vmem>>, %arg2: memref<8x16xf32, #tpu.memory_space<vmem>>, %arg3: memref<8x8xf32, #tpu.memory_space<vmem>>, %arg4: memref<1x4xf32, #tpu.memory_space<vmem>>, %arg5: memref<1x72x4xf32, #tpu.memory_space<vmem>>) attributes {dimension_semantics = [#tpu.dimension_semantics<parallel>], iteration_bounds = array<i64: 2>, scalar_prefetch = 0 : i64, scratch_operands = 0 : i64, tpu.core_type = #tpu.core_type<tc>, window_params = [{transform_indices = @transform_0, window_bounds = array<i64: 1, 2, 88, 8>}, {pipeline_mode = #tpu.pipeline_mode<synchronous>, transform_indices = @transform_1, window_bounds = array<i64: 8, 16>}, {pipeline_mode = #tpu.pipeline_mode<synchronous>, transform_indices = @transform_2, window_bounds = array<i64: 8, 8>}, {pipeline_mode = #tpu.pipeline_mode<synchronous>, transform_indices = @transform_3, window_bounds = array<i64: 1, 4>}, {transform_indices = @transform_4, window_bounds = array<i64: 1, 72, 4>}]} {
    %c0 = arith.constant 0 : index
    %c0_0 = arith.constant 0 : index
    %c0_1 = arith.constant 0 : index
    %c0_2 = arith.constant 0 : index
    %0 = vector.load %arg1[%c0, %c0_0, %c0_1, %c0_2] : memref<1x2x88x8xf32, #tpu.memory_space<vmem>>, vector<1x1x88x8xf32>
    %1 = vector.shape_cast %0 : vector<1x1x88x8xf32> to vector<88x8xf32>
    %c0_3 = arith.constant 0 : index
    %c0_4 = arith.constant 0 : index
    %2 = vector.load %arg2[%c0_3, %c0_4] : memref<8x16xf32, #tpu.memory_space<vmem>>, vector<8x16xf32>
    %cst = arith.constant dense<0.000000e+00> : vector<88x16xf32>
    %3 = tpu.matmul %1, %2, %cst {dimension_numbers = #tpu.dot_dimension_numbers<[1], [0], [0], [1], [0, 0, 1, 1], [], []>} : vector<88x8xf32>, vector<8x16xf32>, vector<88x16xf32> -> vector<88x16xf32>
    %c0_5 = arith.constant 0 : index
    %c1 = arith.constant 1 : index
    %c0_6 = arith.constant 0 : index
    %c0_7 = arith.constant 0 : index
    %4 = vector.load %arg1[%c0_5, %c1, %c0_6, %c0_7] : memref<1x2x88x8xf32, #tpu.memory_space<vmem>>, vector<1x1x88x8xf32>
    %5 = vector.shape_cast %4 : vector<1x1x88x8xf32> to vector<88x8xf32>
    %c0_8 = arith.constant 0 : index
    %c0_9 = arith.constant 0 : index
    %6 = vector.load %arg3[%c0_8, %c0_9] : memref<8x8xf32, #tpu.memory_space<vmem>>, vector<8x8xf32>
    %cst_10 = arith.constant dense<0.000000e+00> : vector<88x8xf32>
    %7 = tpu.matmul %5, %6, %cst_10 {dimension_numbers = #tpu.dot_dimension_numbers<[1], [0], [0], [1], [0, 0, 1, 1], [], []>} : vector<88x8xf32>, vector<8x8xf32>, vector<88x8xf32> -> vector<88x8xf32>
    %8 = vector.extract_strided_slice %3 {offsets = [0, 4], sizes = [88, 4], strides = [1, 1]} : vector<88x16xf32> to vector<88x4xf32>
    %9 = vector.extract_strided_slice %7 {offsets = [0, 4], sizes = [88, 4], strides = [1, 1]} : vector<88x8xf32> to vector<88x4xf32>
    %10 = arith.addf %8, %9 : vector<88x4xf32>
    %11 = vector.extract_strided_slice %3 {offsets = [0, 0], sizes = [72, 4], strides = [1, 1]} : vector<88x16xf32> to vector<72x4xf32>
    %12 = vector.extract_strided_slice %7 {offsets = [0, 0], sizes = [72, 4], strides = [1, 1]} : vector<88x8xf32> to vector<72x4xf32>
    %13 = arith.addf %11, %12 : vector<72x4xf32>
    %14 = vector.extract_strided_slice %10 {offsets = [1, 0], sizes = [72, 4], strides = [1, 1]} : vector<88x4xf32> to vector<72x4xf32>
    %15 = arith.addf %13, %14 : vector<72x4xf32>
    %16 = vector.extract_strided_slice %3 {offsets = [9, 8], sizes = [72, 4], strides = [1, 1]} : vector<88x16xf32> to vector<72x4xf32>
    %17 = arith.addf %15, %16 : vector<72x4xf32>
    %18 = vector.extract_strided_slice %3 {offsets = [10, 12], sizes = [72, 4], strides = [1, 1]} : vector<88x16xf32> to vector<72x4xf32>
    %19 = arith.addf %17, %18 : vector<72x4xf32>
    %c0_11 = arith.constant 0 : index
    %c0_12 = arith.constant 0 : index
    %20 = vector.load %arg4[%c0_11, %c0_12] : memref<1x4xf32, #tpu.memory_space<vmem>>, vector<1x4xf32>
    %21 = vector.broadcast %20 : vector<1x4xf32> to vector<72x4xf32>
    %22 = arith.addf %19, %21 : vector<72x4xf32>
    %c0_13 = arith.constant 0 : index
    %c0_14 = arith.constant 0 : index
    %c0_15 = arith.constant 0 : index
    %23 = vector.load %arg5[%c0_13, %c0_14, %c0_15] : memref<1x72x4xf32, #tpu.memory_space<vmem>>, vector<1x72x4xf32>
    %24 = vector.shape_cast %23 : vector<1x72x4xf32> to vector<72x4xf32>
    %25 = vector.shape_cast %22 : vector<72x4xf32> to vector<1x72x4xf32>
    tpu.vector_store %arg5[%c0_13, %c0_14, %c0_15], %25 {strides = array<i32>} : memref<1x72x4xf32, #tpu.memory_space<vmem>>, vector<1x72x4xf32>,
    return
  }
  func.func @transform_0(%arg0: i32) -> (i32, i32, i32, i32) {
    %c0_i32 = arith.constant 0 : i32
    %c0_i32_0 = arith.constant 0 : i32
    %c0_i32_1 = arith.constant 0 : i32
    %c0_i32_2 = arith.constant 0 : i32
    return %arg0, %c0_i32, %c0_i32_0, %c0_i32_1 : i32, i32, i32, i32
  }
  func.func @transform_1(%arg0: i32) -> (i32, i32) {
    %c0_i32 = arith.constant 0 : i32
    %c0_i32_0 = arith.constant 0 : i32
    %c0_i32_1 = arith.constant 0 : i32
    return %c0_i32, %c0_i32_0 : i32, i32
  }
  func.func @transform_2(%arg0: i32) -> (i32, i32) {
    %c0_i32 = arith.constant 0 : i32
    %c0_i32_0 = arith.constant 0 : i32
    %c0_i32_1 = arith.constant 0 : i32
    return %c0_i32, %c0_i32_0 : i32, i32
  }
  func.func @transform_3(%arg0: i32) -> (i32, i32) {
    %c0_i32 = arith.constant 0 : i32
    %c0_i32_0 = arith.constant 0 : i32
    %c0_i32_1 = arith.constant 0 : i32
    return %c0_i32, %c0_i32_0 : i32, i32
  }
  func.func @transform_4(%arg0: i32) -> (i32, i32, i32) {
    %c0_i32 = arith.constant 0 : i32
    %c0_i32_0 = arith.constant 0 : i32
    %c0_i32_1 = arith.constant 0 : i32
    return %arg0, %c0_i32, %c0_i32_0 : i32, i32, i32
  }
}

</mosaic_0001>

<llo_original>
// kernel: downsample_block.1
$region0: #{downsample_block.1}
  #allocation0 [shape = 'u32[]', space=smem, size = 0x4, offset = 0x4, fixed_abs, tag = 'smem constant byte address 0x4 - core index']
  #allocation1 [shape = 'u32[144,128]{1,0:T(1,128)}', space=vmem, size = 0x12000, scoped, tag = 'internal scratch']
  %s0 = inlined_call_operand.vmem [shape: f32[2,2,88,8], index: 0, kind: input, shape index: {}]
  %s1 = inlined_call_operand.vmem [shape: f32[8,16], index: 1, kind: input, shape index: {}]
  %s2 = inlined_call_operand.vmem [shape: f32[8,8], index: 2, kind: input, shape index: {}]
  %s3 = inlined_call_operand.vmem [shape: f32[1,4], index: 3, kind: input, shape index: {}]
  %s4 = inlined_call_operand.vmem [shape: f32[2,72,4], index: 4, kind: output, shape index: {}]
  %s5 = sld [smem:[#allocation0]]
  $region49: #{downsample_block.1} parent=0
    _
  %s7 = ssub.s32 1, %s5
  %s8 = scalar_select 0, %s7, %s5
  loop: start=0, step=1, limit=4
  $region2: #{downsample_block.1} parent=0 // loop_pre_header
    _
  $region3: #{downsample_block.1} parent=0 // loop_header
    %s10 = sphi 0, %s14
    %p11 = scmp.ge.s32.totalorder %s10, 4
    %s20 = sphi 0, %s22
    %s23 = sphi 0, %s20
    %s24 = sphi 0, %s23
    %s40 = sphi 0, %s24
    %s44 = sphi 0, %s44
    %s46 = sphi 0, %s44
    %s47 = sphi 0, %s46
    %s61 = sphi 0, %s47
    %s65 = sphi 0, %s65
    %s67 = sphi 0, %s65
    %s68 = sphi 0, %s67
    %s82 = sphi 0, %s68
    %s86 = sphi 0, %s86
    %s88 = sphi 0, %s86
    %s89 = sphi 0, %s88
    %s103 = sphi 0, %s89
    %s109 = sphi 0, %s111
    %s112 = sphi 0, %s109
    %s113 = sphi 0, %s112
    %s129 = sphi 0, %s113
  $region4: #{downsample_block.1} parent=0 // loop_header_branch
    %13 = sbr.rel (%p11) target = $region8
  $region5: #{downsample_block.1} parent=0 // loop_body
    %s15 = ssub.s32 %s10, 1
    %s16 = ssub.s32 %s10, 2
    %s17 = sadd.s32 %s10, 1
    %s18 = ssub.s32 %s10, %s17
    %p19 = scmp.eq.s32.totalorder %s18, 0
    %s21 = sadd.s32 %s20, 1
    %s22 = scalar_select %p19, %s20, %s21
    %p25 = pneg %p19
    %p26 = scmp.eq.s32.totalorder %s10, 1
    %p27 = por %p25, %p26
    %p28 = scmp.ne.s32.totalorder %s20, %s23
    %p29 = scmp.eq.s32.totalorder %s10, 0
    %p30 = por %p28, %p29
    %p31 = scmp.ne.s32.totalorder %s20, %s23
    %p32 = scmp.eq.s32.totalorder %s15, 1
    %p33 = por %p31, %p32
    %p34 = scmp.ne.s32.totalorder %s23, %s24
    %p35 = scmp.eq.s32.totalorder %s15, 0
    %p36 = por %p34, %p35
    %p37 = scmp.ne.s32.totalorder %s23, %s24
    %p38 = scmp.eq.s32.totalorder %s16, 1
    %p39 = por %p37, %p38
    %p41 = scmp.ne.s32.totalorder %s24, %s40
    %p42 = scmp.eq.s32.totalorder %s16, 0
    %p43 = por %p41, %p42
    %s45 = sadd.s32 %s44, 1
    %p48 = scmp.eq.s32.totalorder %s10, 1
    %p49 = scmp.ne.s32.totalorder %s44, %s46
    %p50 = scmp.eq.s32.totalorder %s10, 0
    %p51 = por %p49, %p50
    %p52 = scmp.ne.s32.totalorder %s44, %s46
    %p53 = scmp.eq.s32.totalorder %s15, 1
    %p54 = por %p52, %p53
    %p55 = scmp.ne.s32.totalorder %s46, %s47
    %p56 = scmp.eq.s32.totalorder %s15, 0
    %p57 = por %p55, %p56
    %p58 = scmp.ne.s32.totalorder %s46, %s47
    %p59 = scmp.eq.s32.totalorder %s16, 1
    %p60 = por %p58, %p59
    %p62 = scmp.ne.s32.totalorder %s47, %s61
    %p63 = scmp.eq.s32.totalorder %s16, 0
    %p64 = por %p62, %p63
    %s66 = sadd.s32 %s65, 1
    %p69 = scmp.eq.s32.totalorder %s10, 1
    %p70 = scmp.ne.s32.totalorder %s65, %s67
    %p71 = scmp.eq.s32.totalorder %s10, 0
    %p72 = por %p70, %p71
    %p73 = scmp.ne.s32.totalorder %s65, %s67
    %p74 = scmp.eq.s32.totalorder %s15, 1
    %p75 = por %p73, %p74
    %p76 = scmp.ne.s32.totalorder %s67, %s68
    %p77 = scmp.eq.s32.totalorder %s15, 0
    %p78 = por %p76, %p77
    %p79 = scmp.ne.s32.totalorder %s67, %s68
    %p80 = scmp.eq.s32.totalorder %s16, 1
    %p81 = por %p79, %p80
    %p83 = scmp.ne.s32.totalorder %s68, %s82
    %p84 = scmp.eq.s32.totalorder %s16, 0
    %p85 = por %p83, %p84
    %s87 = sadd.s32 %s86, 1
    %p90 = scmp.eq.s32.totalorder %s10, 1
    %p91 = scmp.ne.s32.totalorder %s86, %s88
    %p92 = scmp.eq.s32.totalorder %s10, 0
    %p93 = por %p91, %p92
    %p94 = scmp.ne.s32.totalorder %s86, %s88
    %p95 = scmp.eq.s32.totalorder %s15, 1
    %p96 = por %p94, %p95
    %p97 = scmp.ne.s32.totalorder %s88, %s89
    %p98 = scmp.eq.s32.totalorder %s15, 0
    %p99 = por %p97, %p98
    %p100 = scmp.ne.s32.totalorder %s88, %s89
    %p101 = scmp.eq.s32.totalorder %s16, 1
    %p102 = por %p100, %p101
    %p104 = scmp.ne.s32.totalorder %s89, %s103
    %p105 = scmp.eq.s32.totalorder %s16, 0
    %p106 = por %p104, %p105
    %s107 = ssub.s32 %s10, %s17
    %p108 = scmp.eq.s32.totalorder %s107, 0
    %s110 = sadd.s32 %s109, 1
    %s111 = scalar_select %p108, %s109, %s110
    %p114 = pneg %p108
    %p115 = scmp.eq.s32.totalorder %s10, 1
    %p116 = por %p114, %p115
    %p117 = scmp.ne.s32.totalorder %s109, %s112
    %p118 = scmp.eq.s32.totalorder %s10, 0
    %p119 = por %p117, %p118
    %p120 = scmp.ne.s32.totalorder %s109, %s112
    %p121 = scmp.eq.s32.totalorder %s15, 1
    %p122 = por %p120, %p121
    %p123 = scmp.ne.s32.totalorder %s112, %s113
    %p124 = scmp.eq.s32.totalorder %s15, 0
    %p125 = por %p123, %p124
    %p126 = scmp.ne.s32.totalorder %s112, %s113
    %p127 = scmp.eq.s32.totalorder %s16, 1
    %p128 = por %p126, %p127
    %p130 = scmp.ne.s32.totalorder %s113, %s129
    %p131 = scmp.eq.s32.totalorder %s16, 0
    %p132 = por %p130, %p131
    %p133 = scmp.le.s32.totalorder 1, %s10
    %p134 = scmp.lt.s32.totalorder %s10, 3
    %p135 = pnand %p133, %p134
    %p136 = pneg %p135
    // Predicated region
    $region9: #{downsample_block.1} parent=5 // pred_check
      _
    $region10: #{downsample_block.1} parent=5 // pred_check_branch
      %138 = sbr.rel (%p135) target = $region12
    $region11: #{downsample_block.1} parent=5 // pred_region
      %s139 = ssub.s32 %s10, 1
      // Predicated region
      $region13: #{downsample_block.1} parent=11 // pred_check
        %p140 = pneg %p57
      $region14: #{downsample_block.1} parent=11 // pred_check_branch
        %142 = sbr.rel (%p140) target = $region16
      $region15: #{downsample_block.1} parent=11 // pred_region
        _
      $region16: #{downsample_block.1} parent=11 // pred_fallthru
        _
      // Predicated region
      $region17: #{downsample_block.1} parent=11 // pred_check
        %p143 = pneg %p78
      $region18: #{downsample_block.1} parent=11 // pred_check_branch
        %145 = sbr.rel (%p143) target = $region20
      $region19: #{downsample_block.1} parent=11 // pred_region
        _
      $region20: #{downsample_block.1} parent=11 // pred_fallthru
        _
      // Predicated region
      $region21: #{downsample_block.1} parent=11 // pred_check
        %p146 = pneg %p99
      $region22: #{downsample_block.1} parent=11 // pred_check_branch
        %148 = sbr.rel (%p146) target = $region24
      $region23: #{downsample_block.1} parent=11 // pred_region
        _
      $region24: #{downsample_block.1} parent=11 // pred_fallthru
        _
    $region12: #{downsample_block.1} parent=5 // pred_fallthru
      _
    %p149 = scmp.lt.s32.totalorder %s10, 2
    // Predicated region
    $region25: #{downsample_block.1} parent=5 // pred_check
      %p150 = pneg %p149
    $region26: #{downsample_block.1} parent=5 // pred_check_branch
      %152 = sbr.rel (%p150) target = $region28
    $region27: #{downsample_block.1} parent=5 // pred_region
      // Predicated region
      $region29: #{downsample_block.1} parent=27 // pred_check
        %p153 = pneg %p30
      $region30: #{downsample_block.1} parent=27 // pred_check_branch
        %155 = sbr.rel (%p153) target = $region32
      $region31: #{downsample_block.1} parent=27 // pred_region
        %p156 = scmp.lt.s32.totalorder %s10, 1
        %s157 = scalar_select %p156, %s10, 1
        %s158 = smul.addr %s157, 22
        %s159 = smul.addr %s158, 8
        %s160 = scalar_lea.vmem %s0, %s159
      $region32: #{downsample_block.1} parent=27 // pred_fallthru
        _
    $region28: #{downsample_block.1} parent=5 // pred_fallthru
      _
    %p161 = scmp.le.s32.totalorder 1, %s10
    %p162 = scmp.lt.s32.totalorder %s10, 3
    %p163 = pnand %p161, %p162
    %p164 = pneg %p163
    // Predicated region
    $region33: #{downsample_block.1} parent=5 // pred_check
      _
    $region34: #{downsample_block.1} parent=5 // pred_check_branch
      %166 = sbr.rel (%p163) target = $region36
    $region35: #{downsample_block.1} parent=5 // pred_region
      %s167 = ssub.s32 %s10, 1
      %p168 = scmp.lt.s32.totalorder %s15, 1
      %s169 = scalar_select %p168, %s15, 1
      %s170 = smul.addr %s169, 22
      %s171 = smul.addr %s170, 8
      %s172 = scalar_lea.vmem %s0, %s171
      %p173 = pneg %p36
      %p174 = pneg %p33
      %p175 = pneg %p57
      %p176 = pneg %p54
      %p177 = pneg %p78
      %p178 = pneg %p75
      %p179 = pneg %p99
      %p180 = pneg %p96
      %p181 = pneg %p125
      %p182 = pneg %p122
      %p183 = scmp.lt.s32.totalorder %s15, 1
      %s184 = scalar_select %p183, %s15, 1
      %s185 = smul.addr %s184, 9
      %s186 = smul.addr %s185, 8
      %s187 = scalar_lea.vmem %s4, %s186
      %p188 = scmp.lt.s32.totalorder %s15, 1
      %s189 = scalar_select %p188, %s15, 1
      %s190 = smul.addr %s189, 22
      %s191 = smul.addr %s190, 8
      %s192 = scalar_lea.vmem %s0, %s191
      %p193 = scmp.lt.s32.totalorder %s15, 1
      %s194 = scalar_select %p193, %s15, 1
      %s195 = smul.addr %s194, 9
      %s196 = smul.addr %s195, 8
      %s197 = scalar_lea.vmem %s4, %s196
      %v198 = vld [vmem:[%s192] sm:$0xff]
      %v199 = vld [vmem:[%s192 + $0x8] sm:$0xff]
      %v200 = vld [vmem:[%s192 + $0x10] sm:$0xff]
      %v201 = vld [vmem:[%s192 + $0x18] sm:$0xff]
      %v202 = vld [vmem:[%s192 + $0x20] sm:$0xff]
      %v203 = vld [vmem:[%s192 + $0x28] sm:$0xff]
      %v204 = vld [vmem:[%s192 + $0x30] sm:$0xff]
      %v205 = vld [vmem:[%s192 + $0x38] sm:$0xff]
      %v206 = vld [vmem:[%s192 + $0x40] sm:$0xff]
      %v207 = vld [vmem:[%s192 + $0x48] sm:$0xff]
      %v208 = vld [vmem:[%s192 + $0x50] sm:$0xff]
      %v209 = vld [vmem:[%s1] sm:$0xff]
      %vm210 = vcmask 64512
      %v212 = vsel %vm210, %v198, 0
      %v215 = vsel %vm210, %v199, 0
      %v218 = vsel %vm210, %v200, 0
      %v221 = vsel %vm210, %v201, 0
      %v224 = vsel %vm210, %v202, 0
      %v227 = vsel %vm210, %v203, 0
      %v230 = vsel %vm210, %v204, 0
      %v233 = vsel %vm210, %v205, 0
      %v236 = vsel %vm210, %v206, 0
      %v239 = vsel %vm210, %v207, 0
      %v242 = vsel %vm210, %v208, 0
      %244 = vmatprep.subr.mxu0 0.0
      %245 = vmatpush1.msra.mxu0 0.0
      %246 = vmatprep.subr.mxu0 0.0
      %247 = vmatpush1.msra.mxu0 0.0
      %248 = vmatprep.subr.mxu0 0.0
      %249 = vmatpush1.msra.mxu0 0.0
      %250 = vmatprep.subr.mxu0 0.0
      %251 = vmatpush1.msra.mxu0 0.0
      %252 = vmatprep.subr.mxu0 0.0
      %253 = vmatpush1.msra.mxu0 0.0
      %254 = vmatprep.subr.mxu0 0.0
      %255 = vmatpush1.msra.mxu0 0.0
      %256 = vmatprep.subr.mxu0 0.0
      %257 = vmatpush1.msra.mxu0 0.0
      %258 = vmatprep.subr.mxu0 0.0
      %259 = vmatpush1.msra.mxu0 0.0
      %260 = vmatprep.subr.mxu0 0.0
      %261 = vmatpush1.msra.mxu0 0.0
      %262 = vmatprep.subr.mxu0 0.0
      %263 = vmatpush1.msra.mxu0 0.0
      %264 = vmatprep.subr.mxu0 0.0
      %265 = vmatpush1.msra.mxu0 0.0
      %266 = vmatprep.subr.mxu0 0.0
      %267 = vmatpush1.msra.mxu0 0.0
      %268 = vmatprep.subr.mxu0 0.0
      %269 = vmatpush1.msra.mxu0 0.0
      %270 = vmatprep.subr.mxu0 0.0
      %271 = vmatpush1.msra.mxu0 0.0
      %272 = vmatprep.subr.mxu0 0.0
      %273 = vmatpush1.msra.mxu0 0.0
      %274 = vmatprep.subr.mxu0 0.0
      %275 = vmatpush1.msra.mxu0 %v209
      %276 = vmatprep.subr.mxu0 0.0
      %277 = vmatpush2.msra.mxu0 0.0
      %278 = vmatprep.subr.mxu0 0.0
      %279 = vmatpush2.msra.mxu0 0.0
      %280 = vmatprep.subr.mxu0 0.0
      %281 = vmatpush2.msra.mxu0 0.0
      %282 = vmatprep.subr.mxu0 0.0
      %283 = vmatpush2.msra.mxu0 0.0
      %284 = vmatprep.subr.mxu0 0.0
      %285 = vmatpush2.msra.mxu0 0.0
      %286 = vmatprep.subr.mxu0 0.0
      %287 = vmatpush2.msra.mxu0 0.0
      %288 = vmatprep.subr.mxu0 0.0
      %289 = vmatpush2.msra.mxu0 0.0
      %290 = vmatprep.subr.mxu0 0.0
      %291 = vmatpush2.msra.mxu0 0.0
      %292 = vmatprep.subr.mxu0 0.0
      %293 = vmatpush2.msra.mxu0 0.0
      %294 = vmatprep.subr.mxu0 0.0
      %295 = vmatpush2.msra.mxu0 0.0
      %296 = vmatprep.subr.mxu0 0.0
      %297 = vmatpush2.msra.mxu0 0.0
      %298 = vmatprep.subr.mxu0 0.0
      %299 = vmatpush2.msra.mxu0 0.0
      %300 = vmatprep.subr.mxu0 0.0
      %301 = vmatpush2.msra.mxu0 0.0
      %302 = vmatprep.subr.mxu0 0.0
      %303 = vmatpush2.msra.mxu0 0.0
      %304 = vmatprep.subr.mxu0 0.0
      %305 = vmatpush2.msra.mxu0 0.0
      %306 = vmatprep.subr.mxu0 0.0
      %307 = vmatpush2.msra.mxu0 0.0
      %308 = vmatprep.mubr.f32.mxu0 0.0
      %309 = vmatmul.mubr.f32.gmra.mxu0 %v212
      %v310 = vpop.f32.mrf.mxu0
      %v311 = vadd.f32 0.0, %v310
      %v312 = vpop.f32.mrf.mxu0
      %313 = vmatprep.mubr.f32.mxu0 0.0
      %314 = vmatmul.mubr.f32.gmra.mxu0 %v215
      %v315 = vpop.f32.mrf.mxu0
      %v316 = vadd.f32 0.0, %v315
      %v317 = vpop.f32.mrf.mxu0
      %318 = vmatprep.mubr.f32.mxu0 0.0
      %319 = vmatmul.mubr.f32.gmra.mxu0 %v218
      %v320 = vpop.f32.mrf.mxu0
      %v321 = vadd.f32 0.0, %v320
      %v322 = vpop.f32.mrf.mxu0
      %323 = vmatprep.mubr.f32.mxu0 0.0
      %324 = vmatmul.mubr.f32.gmra.mxu0 %v221
      %v325 = vpop.f32.mrf.mxu0
      %v326 = vadd.f32 0.0, %v325
      %v327 = vpop.f32.mrf.mxu0
      %328 = vmatprep.mubr.f32.mxu0 0.0
      %329 = vmatmul.mubr.f32.gmra.mxu0 %v224
      %v330 = vpop.f32.mrf.mxu0
      %v331 = vadd.f32 0.0, %v330
      %v332 = vpop.f32.mrf.mxu0
      %333 = vmatprep.mubr.f32.mxu0 0.0
      %334 = vmatmul.mubr.f32.gmra.mxu0 %v227
      %v335 = vpop.f32.mrf.mxu0
      %v336 = vadd.f32 0.0, %v335
      %v337 = vpop.f32.mrf.mxu0
      %338 = vmatprep.mubr.f32.mxu0 0.0
      %339 = vmatmul.mubr.f32.gmra.mxu0 %v230
      %v340 = vpop.f32.mrf.mxu0
      %v341 = vadd.f32 0.0, %v340
      %v342 = vpop.f32.mrf.mxu0
      %343 = vmatprep.mubr.f32.mxu0 0.0
      %344 = vmatmul.mubr.f32.gmra.mxu0 %v233
      %v345 = vpop.f32.mrf.mxu0
      %v346 = vadd.f32 0.0, %v345
      %v347 = vpop.f32.mrf.mxu0
      %348 = vmatprep.mubr.f32.mxu0 0.0
      %349 = vmatmul.mubr.f32.gmra.mxu0 %v236
      %v350 = vpop.f32.mrf.mxu0
      %v351 = vadd.f32 0.0, %v350
      %v352 = vpop.f32.mrf.mxu0
      %353 = vmatprep.mubr.f32.mxu0 0.0
      %354 = vmatmul.mubr.f32.gmra.mxu0 %v239
      %v355 = vpop.f32.mrf.mxu0
      %v356 = vadd.f32 0.0, %v355
      %v357 = vpop.f32.mrf.mxu0
      %358 = vmatprep.mubr.f32.mxu0 0.0
      %359 = vmatmul.mubr.f32.gmra.mxu0 %v242
      %v360 = vpop.f32.mrf.mxu0
      %v361 = vadd.f32 0.0, %v360
      %v362 = vpop.f32.mrf.mxu0
      %363 = vdwg.mxu0
      %s364 = scalar_lea.vmem %s192, 88
      %v365 = vld [vmem:[%s364] sm:$0xff]
      %v366 = vld [vmem:[%s364 + $0x8] sm:$0xff]
      %v367 = vld [vmem:[%s364 + $0x10] sm:$0xff]
      %v368 = vld [vmem:[%s364 + $0x18] sm:$0xff]
      %v369 = vld [vmem:[%s364 + $0x20] sm:$0xff]
      %v370 = vld [vmem:[%s364 + $0x28] sm:$0xff]
      %v371 = vld [vmem:[%s364 + $0x30] sm:$0xff]
      %v372 = vld [vmem:[%s364 + $0x38] sm:$0xff]
      %v373 = vld [vmem:[%s364 + $0x40] sm:$0xff]
      %v374 = vld [vmem:[%s364 + $0x48] sm:$0xff]
      %v375 = vld [vmem:[%s364 + $0x50] sm:$0xff]
      %v376 = vld [vmem:[%s2] sm:$0xff]
      %v378 = vsel %vm210, %v365, 0
      %v381 = vsel %vm210, %v366, 0
      %v384 = vsel %vm210, %v367, 0
      %v387 = vsel %vm210, %v368, 0
      %v390 = vsel %vm210, %v369, 0
      %v393 = vsel %vm210, %v370, 0
      %v396 = vsel %vm210, %v371, 0
      %v399 = vsel %vm210, %v372, 0
      %v402 = vsel %vm210, %v373, 0
      %v405 = vsel %vm210, %v374, 0
      %v408 = vsel %vm210, %v375, 0
      %410 = vmatprep.subr.mxu0 0.0
      %411 = vmatpush1.msra.mxu0 0.0
      %412 = vmatprep.subr.mxu0 0.0
      %413 = vmatpush1.msra.mxu0 0.0
      %414 = vmatprep.subr.mxu0 0.0
      %415 = vmatpush1.msra.mxu0 0.0
      %416 = vmatprep.subr.mxu0 0.0
      %417 = vmatpush1.msra.mxu0 0.0
      %418 = vmatprep.subr.mxu0 0.0
      %419 = vmatpush1.msra.mxu0 0.0
      %420 = vmatprep.subr.mxu0 0.0
      %421 = vmatpush1.msra.mxu0 0.0
      %422 = vmatprep.subr.mxu0 0.0
      %423 = vmatpush1.msra.mxu0 0.0
      %424 = vmatprep.subr.mxu0 0.0
      %425 = vmatpush1.msra.mxu0 0.0
      %426 = vmatprep.subr.mxu0 0.0
      %427 = vmatpush1.msra.mxu0 0.0
      %428 = vmatprep.subr.mxu0 0.0
      %429 = vmatpush1.msra.mxu0 0.0
      %430 = vmatprep.subr.mxu0 0.0
      %431 = vmatpush1.msra.mxu0 0.0
      %432 = vmatprep.subr.mxu0 0.0
      %433 = vmatpush1.msra.mxu0 0.0
      %434 = vmatprep.subr.mxu0 0.0
      %435 = vmatpush1.msra.mxu0 0.0
      %436 = vmatprep.subr.mxu0 0.0
      %437 = vmatpush1.msra.mxu0 0.0
      %438 = vmatprep.subr.mxu0 0.0
      %439 = vmatpush1.msra.mxu0 0.0
      %440 = vmatprep.subr.mxu0 0.0
      %441 = vmatpush1.msra.mxu0 %v376
      %442 = vmatprep.subr.mxu0 0.0
      %443 = vmatpush2.msra.mxu0 0.0
      %444 = vmatprep.subr.mxu0 0.0
      %445 = vmatpush2.msra.mxu0 0.0
      %446 = vmatprep.subr.mxu0 0.0
      %447 = vmatpush2.msra.mxu0 0.0
      %448 = vmatprep.subr.mxu0 0.0
      %449 = vmatpush2.msra.mxu0 0.0
      %450 = vmatprep.subr.mxu0 0.0
      %451 = vmatpush2.msra.mxu0 0.0
      %452 = vmatprep.subr.mxu0 0.0
      %453 = vmatpush2.msra.mxu0 0.0
      %454 = vmatprep.subr.mxu0 0.0
      %455 = vmatpush2.msra.mxu0 0.0
      %456 = vmatprep.subr.mxu0 0.0
      %457 = vmatpush2.msra.mxu0 0.0
      %458 = vmatprep.subr.mxu0 0.0
      %459 = vmatpush2.msra.mxu0 0.0
      %460 = vmatprep.subr.mxu0 0.0
      %461 = vmatpush2.msra.mxu0 0.0
      %462 = vmatprep.subr.mxu0 0.0
      %463 = vmatpush2.msra.mxu0 0.0
      %464 = vmatprep.subr.mxu0 0.0
      %465 = vmatpush2.msra.mxu0 0.0
      %466 = vmatprep.subr.mxu0 0.0
      %467 = vmatpush2.msra.mxu0 0.0
      %468 = vmatprep.subr.mxu0 0.0
      %469 = vmatpush2.msra.mxu0 0.0
      %470 = vmatprep.subr.mxu0 0.0
      %471 = vmatpush2.msra.mxu0 0.0
      %472 = vmatprep.subr.mxu0 0.0
      %473 = vmatpush2.msra.mxu0 0.0
      %474 = vmatprep.mubr.f32.mxu0 0.0
      %475 = vmatmul.mubr.f32.gmra.mxu0 %v378
      %v476 = vpop.f32.mrf.mxu0
      %v477 = vadd.f32 0.0, %v476
      %v478 = vpop.f32.mrf.mxu0
      %479 = vmatprep.mubr.f32.mxu0 0.0
      %480 = vmatmul.mubr.f32.gmra.mxu0 %v381
      %v481 = vpop.f32.mrf.mxu0
      %v482 = vadd.f32 0.0, %v481
      %v483 = vpop.f32.mrf.mxu0
      %484 = vmatprep.mubr.f32.mxu0 0.0
      %485 = vmatmul.mubr.f32.gmra.mxu0 %v384
      %v486 = vpop.f32.mrf.mxu0
      %v487 = vadd.f32 0.0, %v486
      %v488 = vpop.f32.mrf.mxu0
      %489 = vmatprep.mubr.f32.mxu0 0.0
      %490 = vmatmul.mubr.f32.gmra.mxu0 %v387
      %v491 = vpop.f32.mrf.mxu0
      %v492 = vadd.f32 0.0, %v491
      %v493 = vpop.f32.mrf.mxu0
      %494 = vmatprep.mubr.f32.mxu0 0.0
      %495 = vmatmul.mubr.f32.gmra.mxu0 %v390
      %v496 = vpop.f32.mrf.mxu0
      %v497 = vadd.f32 0.0, %v496
      %v498 = vpop.f32.mrf.mxu0
      %499 = vmatprep.mubr.f32.mxu0 0.0
      %500 = vmatmul.mubr.f32.gmra.mxu0 %v393
      %v501 = vpop.f32.mrf.mxu0
      %v502 = vadd.f32 0.0, %v501
      %v503 = vpop.f32.mrf.mxu0
      %504 = vmatprep.mubr.f32.mxu0 0.0
      %505 = vmatmul.mubr.f32.gmra.mxu0 %v396
      %v506 = vpop.f32.mrf.mxu0
      %v507 = vadd.f32 0.0, %v506
      %v508 = vpop.f32.mrf.mxu0
      %509 = vmatprep.mubr.f32.mxu0 0.0
      %510 = vmatmul.mubr.f32.gmra.mxu0 %v399
      %v511 = vpop.f32.mrf.mxu0
      %v512 = vadd.f32 0.0, %v511
      %v513 = vpop.f32.mrf.mxu0
      %514 = vmatprep.mubr.f32.mxu0 0.0
      %515 = vmatmul.mubr.f32.gmra.mxu0 %v402
      %v516 = vpop.f32.mrf.mxu0
      %v517 = vadd.f32 0.0, %v516
      %v518 = vpop.f32.mrf.mxu0
      %519 = vmatprep.mubr.f32.mxu0 0.0
      %520 = vmatmul.mubr.f32.gmra.mxu0 %v405
      %v521 = vpop.f32.mrf.mxu0
      %v522 = vadd.f32 0.0, %v521
      %v523 = vpop.f32.mrf.mxu0
      %524 = vmatprep.mubr.f32.mxu0 0.0
      %525 = vmatmul.mubr.f32.gmra.mxu0 %v408
      %v526 = vpop.f32.mrf.mxu0
      %v527 = vpop.f32.mrf.mxu0
      %528 = vdwg.mxu0
      %v529 = vadd.f32 %v311, %v477
      %v530 = vadd.f32 %v316, %v482
      %v531 = vadd.f32 %v321, %v487
      %v532 = vadd.f32 %v326, %v492
      %v533 = vadd.f32 %v331, %v497
      %v534 = vadd.f32 %v336, %v502
      %v535 = vadd.f32 %v341, %v507
      %v536 = vadd.f32 %v346, %v512
      %v537 = vadd.f32 %v351, %v517
      %v538 = vadd.f32 %v356, %v522
      %vm549 = vcmask 1046528
      %v550 = vrot.slane %v529, 1
      %v551 = vrot.slane %v530, 1
      %v552 = vsel %vm549, %v550, %v551
      %v553 = vrot.slane %v531, 1
      %v554 = vsel %vm549, %v551, %v553
      %v555 = vrot.slane %v532, 1
      %v556 = vsel %vm549, %v553, %v555
      %v557 = vrot.slane %v533, 1
      %v558 = vsel %vm549, %v555, %v557
      %v559 = vrot.slane %v534, 1
      %v560 = vsel %vm549, %v557, %v559
      %v561 = vrot.slane %v535, 1
      %v562 = vsel %vm549, %v559, %v561
      %v563 = vrot.slane %v536, 1
      %v564 = vsel %vm549, %v561, %v563
      %v565 = vrot.slane %v537, 1
      %v566 = vsel %vm549, %v563, %v565
      %v567 = vrot.slane %v538, 1
      %v568 = vsel %vm549, %v565, %v567
      %569 = vrot.lane.b32.xlu0 %v552, 124
      %v570 = vpop.permute.xlu0 %569
      %571 = vrot.lane.b32.xlu0 %v554, 124
      %v572 = vpop.permute.xlu0 %571
      %573 = vrot.lane.b32.xlu0 %v556, 124
      %v574 = vpop.permute.xlu0 %573
      %575 = vrot.lane.b32.xlu0 %v558, 124
      %v576 = vpop.permute.xlu0 %575
      %577 = vrot.lane.b32.xlu0 %v560, 124
      %v578 = vpop.permute.xlu0 %577
      %579 = vrot.lane.b32.xlu0 %v562, 124
      %v580 = vpop.permute.xlu0 %579
      %581 = vrot.lane.b32.xlu0 %v564, 124
      %v582 = vpop.permute.xlu0 %581
      %583 = vrot.lane.b32.xlu0 %v566, 124
      %v584 = vpop.permute.xlu0 %583
      %585 = vrot.lane.b32.xlu0 %v568, 124
      %v586 = vpop.permute.xlu0 %585
      %v596 = vadd.f32 %v529, %v570
      %v597 = vadd.f32 %v530, %v572
      %v598 = vadd.f32 %v531, %v574
      %v599 = vadd.f32 %v532, %v576
      %v600 = vadd.f32 %v533, %v578
      %v601 = vadd.f32 %v534, %v580
      %v602 = vadd.f32 %v535, %v582
      %v603 = vadd.f32 %v536, %v584
      %v604 = vadd.f32 %v537, %v586
      %v615 = vrot.slane %v316, 1
      %v616 = vrot.slane %v321, 1
      %v617 = vsel %vm549, %v615, %v616
      %v618 = vrot.slane %v326, 1
      %v619 = vsel %vm549, %v616, %v618
      %v620 = vrot.slane %v331, 1
      %v621 = vsel %vm549, %v618, %v620
      %v622 = vrot.slane %v336, 1
      %v623 = vsel %vm549, %v620, %v622
      %v624 = vrot.slane %v341, 1
      %v625 = vsel %vm549, %v622, %v624
      %v626 = vrot.slane %v346, 1
      %v627 = vsel %vm549, %v624, %v626
      %v628 = vrot.slane %v351, 1
      %v629 = vsel %vm549, %v626, %v628
      %v630 = vrot.slane %v356, 1
      %v631 = vsel %vm549, %v628, %v630
      %v632 = vrot.slane %v361, 1
      %v633 = vsel %vm549, %v630, %v632
      %634 = vrot.lane.b32.xlu0 %v617, 120
      %v635 = vpop.permute.xlu0 %634
      %636 = vrot.lane.b32.xlu0 %v619, 120
      %v637 = vpop.permute.xlu0 %636
      %638 = vrot.lane.b32.xlu0 %v621, 120
      %v639 = vpop.permute.xlu0 %638
      %640 = vrot.lane.b32.xlu0 %v623, 120
      %v641 = vpop.permute.xlu0 %640
      %642 = vrot.lane.b32.xlu0 %v625, 120
      %v643 = vpop.permute.xlu0 %642
      %644 = vrot.lane.b32.xlu0 %v627, 120
      %v645 = vpop.permute.xlu0 %644
      %646 = vrot.lane.b32.xlu0 %v629, 120
      %v647 = vpop.permute.xlu0 %646
      %648 = vrot.lane.b32.xlu0 %v631, 120
      %v649 = vpop.permute.xlu0 %648
      %650 = vrot.lane.b32.xlu0 %v633, 120
      %v651 = vpop.permute.xlu0 %650
      %v661 = vadd.f32 %v596, %v635
      %v662 = vadd.f32 %v597, %v637
      %v663 = vadd.f32 %v598, %v639
      %v664 = vadd.f32 %v599, %v641
      %v665 = vadd.f32 %v600, %v643
      %v666 = vadd.f32 %v601, %v645
      %v667 = vadd.f32 %v602, %v647
      %v668 = vadd.f32 %v603, %v649
      %v669 = vadd.f32 %v604, %v651
      %vm670 = vcmask 1045504
      %v671 = vrot.slane %v316, 2
      %v672 = vrot.slane %v321, 2
      %v673 = vsel %vm670, %v671, %v672
      %v674 = vrot.slane %v326, 2
      %v675 = vsel %vm670, %v672, %v674
      %v676 = vrot.slane %v331, 2
      %v677 = vsel %vm670, %v674, %v676
      %v678 = vrot.slane %v336, 2
      %v679 = vsel %vm670, %v676, %v678
      %v680 = vrot.slane %v341, 2
      %v681 = vsel %vm670, %v678, %v680
      %v682 = vrot.slane %v346, 2
      %v683 = vsel %vm670, %v680, %v682
      %v684 = vrot.slane %v351, 2
      %v685 = vsel %vm670, %v682, %v684
      %v686 = vrot.slane %v356, 2
      %v687 = vsel %vm670, %v684, %v686
      %v688 = vrot.slane %v361, 2
      %v689 = vsel %vm670, %v686, %v688
      %690 = vrot.lane.b32.xlu0 %v673, 116
      %v691 = vpop.permute.xlu0 %690
      %692 = vrot.lane.b32.xlu0 %v675, 116
      %v693 = vpop.permute.xlu0 %692
      %694 = vrot.lane.b32.xlu0 %v677, 116
      %v695 = vpop.permute.xlu0 %694
      %696 = vrot.lane.b32.xlu0 %v679, 116
      %v697 = vpop.permute.xlu0 %696
      %698 = vrot.lane.b32.xlu0 %v681, 116
      %v699 = vpop.permute.xlu0 %698
      %700 = vrot.lane.b32.xlu0 %v683, 116
      %v701 = vpop.permute.xlu0 %700
      %702 = vrot.lane.b32.xlu0 %v685, 116
      %v703 = vpop.permute.xlu0 %702
      %704 = vrot.lane.b32.xlu0 %v687, 116
      %v705 = vpop.permute.xlu0 %704
      %706 = vrot.lane.b32.xlu0 %v689, 116
      %v707 = vpop.permute.xlu0 %706
      %v717 = vadd.f32 %v661, %v691
      %v718 = vadd.f32 %v662, %v693
      %v719 = vadd.f32 %v663, %v695
      %v720 = vadd.f32 %v664, %v697
      %v721 = vadd.f32 %v665, %v699
      %v722 = vadd.f32 %v666, %v701
      %v723 = vadd.f32 %v667, %v703
      %v724 = vadd.f32 %v668, %v705
      %v725 = vadd.f32 %v669, %v707
      %v726 = vld [vmem:[%s3] sm:$0x1]
      %v728 = vlaneseq
      %v729 = vshrl.u32 %v728, 7
      %v730 = vsub.s32 0, %v729
      %v731 = vrot.slane %v726, %v730
      %v733 = vadd.f32 %v717, %v731
      %v734 = vadd.f32 %v718, %v731
      %v735 = vadd.f32 %v719, %v731
      %v736 = vadd.f32 %v720, %v731
      %v737 = vadd.f32 %v721, %v731
      %v738 = vadd.f32 %v722, %v731
      %v739 = vadd.f32 %v723, %v731
      %v740 = vadd.f32 %v724, %v731
      %v741 = vadd.f32 %v725, %v731
      %vm742 = vcmask 31744
      %743 = vst.msk [vmem:[%s197] sm:$0xff] %vm742, %v733
      %744 = vst.msk [vmem:[%s197 + $0x8] sm:$0xff] %vm742, %v734
      %745 = vst.msk [vmem:[%s197 + $0x10] sm:$0xff] %vm742, %v735
      %746 = vst.msk [vmem:[%s197 + $0x18] sm:$0xff] %vm742, %v736
      %747 = vst.msk [vmem:[%s197 + $0x20] sm:$0xff] %vm742, %v737
      %748 = vst.msk [vmem:[%s197 + $0x28] sm:$0xff] %vm742, %v738
      %749 = vst.msk [vmem:[%s197 + $0x30] sm:$0xff] %vm742, %v739
      %750 = vst.msk [vmem:[%s197 + $0x38] sm:$0xff] %vm742, %v740
      %751 = vst.msk [vmem:[%s197 + $0x40] sm:$0xff] %vm742, %v741
      %p752 = scmp.lt.s32.totalorder %s15, 1
      %s753 = scalar_select %p752, %s15, 1
      %s754 = smul.addr %s753, 9
      %s755 = smul.addr %s754, 8
      %s756 = scalar_lea.vmem %s4, %s755
      // Predicated region
      $region37: #{downsample_block.1} parent=35 // pred_check
        %p757 = pneg %p122
      $region38: #{downsample_block.1} parent=35 // pred_check_branch
        %759 = sbr.rel (%p757) target = $region40
      $region39: #{downsample_block.1} parent=35 // pred_region
        _
      $region40: #{downsample_block.1} parent=35 // pred_fallthru
        _
    $region36: #{downsample_block.1} parent=5 // pred_fallthru
      _
    %p760 = scmp.le.s32.totalorder 2, %s10
    // Predicated region
    $region41: #{downsample_block.1} parent=5 // pred_check
      %p761 = pneg %p760
    $region42: #{downsample_block.1} parent=5 // pred_check_branch
      %763 = sbr.rel (%p761) target = $region44
    $region43: #{downsample_block.1} parent=5 // pred_region
      %s764 = ssub.s32 %s10, 2
      // Predicated region
      $region45: #{downsample_block.1} parent=43 // pred_check
        %p765 = pneg %p128
      $region46: #{downsample_block.1} parent=43 // pred_check_branch
        %767 = sbr.rel (%p765) target = $region48
      $region47: #{downsample_block.1} parent=43 // pred_region
        %p768 = scmp.lt.s32.totalorder %s16, 1
        %s769 = scalar_select %p768, %s16, 1
        %s770 = smul.addr %s769, 9
        %s771 = smul.addr %s770, 8
        %s772 = scalar_lea.vmem %s4, %s771
      $region48: #{downsample_block.1} parent=43 // pred_fallthru
        _
    $region44: #{downsample_block.1} parent=5 // pred_fallthru
      _
  $region6: #{downsample_block.1} parent=0 // loop_footer
    %s14 = sadd.s32 1, %s10
  $region7: #{downsample_block.1} parent=0 // loop_footer_branch
    %9 = sbr.rel target = $region3
  $region8: #{downsample_block.1} parent=0 // loop_exit
    _

</llo_original>
